<compile_context>
chip_gen: v5e
topology: v5e:2x2
jax: 0.10.0
libtpu: 0.0.40
codegen_flags: <defaults>
</compile_context>

<pallas_src>
import functools

import jax
import jax.numpy as jnp
from jax.experimental import pallas as pl
from jax.experimental.pallas import tpu as pltpu


# --------------------------------------------------------------------------- #
# helpers
# --------------------------------------------------------------------------- #
def _round_up(v: int, m: int) -> int:
    return ((v + m - 1) // m) * m


def _sublane_multiple(dtype) -> int:
    # f32 -> 8, bf16/f16 -> 16, int8/fp8 -> 32 rows per vreg sublane packing.
    return {4: 8, 2: 16, 1: 32}.get(jnp.dtype(dtype).itemsize, 8)


def _vmem_limit_bytes() -> int:
    """Generation-aware scoped-VMEM limit (~75% of physical, capped at 96 MiB)."""
    cap = 128 * 1024 * 1024  # v5e/v6e physical VMEM; safe fallback
    try:
        info = pltpu.get_tpu_info()
        cap = int(getattr(info, "vmem_capacity_bytes", cap))
    except Exception:
        pass
    # v5e/v6e (128 MiB) -> 96 MiB; v7x (64 MiB) -> 48 MiB.
    return min(96 * 1024 * 1024, (cap * 3) // 4)


# --------------------------------------------------------------------------- #
# kernels
# --------------------------------------------------------------------------- #
def _linear_kernel_fused(x_ref, w_ref, b_ref, o_ref, *, activate: bool):
    """f32 output: accumulate directly into the resident output block (no scratch)."""
    k = pl.program_id(2)

    @pl.when(k == 0)
    def _():
        o_ref[...] = jnp.zeros_like(o_ref)

    # [tm, tk] @ [tk, tn] -> [tm, tn] on the MXU, f32 accumulate.
    o_ref[...] += jnp.dot(x_ref[...], w_ref[...], preferred_element_type=jnp.float32)

    @pl.when(k == pl.num_programs(2) - 1)
    def _():
        out = o_ref[...] + b_ref[...]
        if activate:
            out = jnp.maximum(out, 0.0)  # fused ReLU on the VPU
        o_ref[...] = out


def _linear_kernel_scratch(x_ref, w_ref, b_ref, o_ref, acc_ref, *, activate: bool):
    """non-f32 output: f32 VMEM scratch accumulator, cast once in the epilogue."""
    k = pl.program_id(2)

    @pl.when(k == 0)
    def _():
        acc_ref[...] = jnp.zeros_like(acc_ref)

    acc_ref[...] += jnp.dot(x_ref[...], w_ref[...], preferred_element_type=jnp.float32)

    @pl.when(k == pl.num_programs(2) - 1)
    def _():
        out = acc_ref[...] + b_ref[...]
        if activate:
            out = jnp.maximum(out, 0.0)
        o_ref[...] = out.astype(o_ref.dtype)


# --------------------------------------------------------------------------- #
# module wrapper (parameters prepared once, only x is padded per call)
# --------------------------------------------------------------------------- #
class PallasLinear:
    """y = [ReLU](x @ W^T + b), W in PyTorch [out_feat, in_feat] layout."""

    def __init__(self, weight, bias, activate=True, *,
                 tm=512, tn=512, tk=1024,
                 compute_dtype=None, out_dtype=None, vmem_limit_bytes=None):
        out_feat, in_feat = weight.shape
        assert bias.shape == (out_feat,), "bias must be [out_feat]"
        self.in_feat, self.out_feat = in_feat, out_feat
        self.activate = bool(activate)

        self.compute_dtype = jnp.dtype(compute_dtype) if compute_dtype is not None else None
        w_dtype = self.compute_dtype or jnp.dtype(weight.dtype)
        self.out_dtype = jnp.dtype(out_dtype) if out_dtype is not None else jnp.dtype(weight.dtype)
        self.vmem_limit = int(vmem_limit_bytes) if vmem_limit_bytes else _vmem_limit_bytes()

        # ---- tile selection (N/K independent of batch) ---------------------
        np_full = _round_up(out_feat, 128)
        kp_full = _round_up(in_feat, 128)
        self.tn = min(_round_up(tn, 128), np_full)
        self.tk = min(_round_up(tk, 128), kp_full)

        # Keep >=2 tiles along the (parallel) N axis when possible so v7x's
        # second TensorCore has work even at small batch.
        if self.tn >= np_full and np_full >= 256:
            self.tn = 128 * max(1, (np_full // 128) // 2)

        # Shrink tiles until the double-buffered working set fits the VMEM budget.
        in_isz = jnp.dtype(w_dtype).itemsize
        out_isz = jnp.dtype(self.out_dtype).itemsize
        use_scratch = self.out_dtype != jnp.dtype(jnp.float32)
        budget = int(self.vmem_limit * 0.8)
        tm_est = _round_up(max(8, min(tm, 1024)), 8)

        def usage(tm_, tn_, tk_):
            return (2 * tm_ * tk_ * in_isz          # x tile (double-buffered)
                    + 2 * tk_ * tn_ * in_isz        # W tile
                    + 2 * tn_ * 4                   # bias tile (f32)
                    + 2 * tm_ * tn_ * out_isz       # output tile
                    + (tm_ * tn_ * 4 if use_scratch else 0))

        while usage(tm_est, self.tn, self.tk) > budget:
            if self.tk > 512:
                self.tk //= 2
            elif self.tn > 128:
                self.tn = max(128, self.tn // 2)
            elif tm_est > 8:
                tm_est = max(8, tm_est // 2)
            else:
                break
        self._tm_hint = tm_est

        # ---- prepare parameters ONCE (transpose + pad) ----------------------
        self.Kp = _round_up(in_feat, self.tk)
        self.Np = _round_up(out_feat, self.tn)
        w = jnp.asarray(weight, w_dtype).T                     # [in_feat, out_feat]
        if (self.Kp, self.Np) != (in_feat, out_feat):
            w = jnp.pad(w, ((0, self.Kp - in_feat), (0, self.Np - out_feat)))
        self.w_kn = w                                          # [Kp, Np]
        b = jnp.asarray(bias, jnp.float32)
        if self.Np != out_feat:
            b = jnp.pad(b, (0, self.Np - out_feat))
        self.b_row = b.reshape(1, self.Np)                     # [1, Np], f32

    def __call__(self, x):
        B, in_feat = x.shape
        assert in_feat == self.in_feat, "x must be [batch, in_feat]"
        x_dtype = self.compute_dtype or jnp.dtype(x.dtype)
        sub = _sublane_multiple(x_dtype)

        tm = min(_round_up(self._tm_hint, sub), _round_up(B, sub))
        Mp = _round_up(B, tm)
        Kp, Np, tn, tk = self.Kp, self.Np, self.tn, self.tk

        xp = jnp.asarray(x, x_dtype)
        if (Mp, Kp) != (B, in_feat):
            xp = jnp.pad(xp, ((0, Mp - B), (0, Kp - in_feat)))  # zero K-pad: exact

        gm, gn, gk = Mp // tm, Np // tn, Kp // tk
        use_scratch = self.out_dtype != jnp.dtype(jnp.float32)

        in_isz = jnp.dtype(x_dtype).itemsize
        w_isz = jnp.dtype(self.w_kn.dtype).itemsize
        out_isz = jnp.dtype(self.out_dtype).itemsize
        cost = pl.CostEstimate(
            flops=2 * Mp * Np * Kp,
            transcendentals=0,
            bytes_accessed=(gn * Mp * Kp * in_isz       # x re-read once per N tile
                            + gm * Kp * Np * w_isz      # W re-read once per M tile
                            + gm * Np * 4               # bias
                            + Mp * Np * out_isz),       # output written once
        )

        if use_scratch:
            kernel = functools.partial(_linear_kernel_scratch, activate=self.activate)
            scratch = [pltpu.VMEM((tm, tn), jnp.float32)]
        else:
            kernel = functools.partial(_linear_kernel_fused, activate=self.activate)
            scratch = []

        out = pl.pallas_call(
            kernel,
            out_shape=jax.ShapeDtypeStruct((Mp, Np), self.out_dtype),
            grid_spec=pltpu.PrefetchScalarGridSpec(
                num_scalar_prefetch=0,
                grid=(gm, gn, gk),
                in_specs=[
                    pl.BlockSpec((tm, tk), lambda i, j, k: (i, k)),   # x tile
                    pl.BlockSpec((tk, tn), lambda i, j, k: (k, j)),   # W^T tile [K, N]
                    pl.BlockSpec((1, tn), lambda i, j, k: (0, j)),    # bias tile
                ],
                out_specs=pl.BlockSpec((tm, tn), lambda i, j, k: (i, j)),
                scratch_shapes=scratch,
            ),
            compiler_params=pltpu.CompilerParams(
                dimension_semantics=("parallel", "parallel", "arbitrary"),
                vmem_limit_bytes=self.vmem_limit,
            ),
            cost_estimate=cost,
        )(xp, self.w_kn, self.b_row)

        if (Mp, Np) != (B, self.out_feat):
            out = out[:B, :self.out_feat]
        return out


def linear_forward(x, weight, bias, activate=True, **kwargs):
    """One-off functional form (prefer constructing PallasLinear once for reuse)."""
    return PallasLinear(weight, bias, activate=activate, **kwargs)(x)


def init_linear_params(key, in_feat, out_feat, dtype=jnp.float32):
    # Mimics PyTorch nn.Linear default init: U(-1/sqrt(in), 1/sqrt(in)).
    kw, kb = jax.random.split(key)
    bound = 1.0 / float(in_feat) ** 0.5
    weight = jax.random.uniform(kw, (out_feat, in_feat), dtype, -bound, bound)
    bias = jax.random.uniform(kb, (out_feat,), dtype, -bound, bound)
    return weight, bias


def _ref(x, weight, bias, activate):
    y = x @ weight.T + bias
    return jnp.maximum(y, 0.0) if activate else y


if __name__ == "__main__":
    key = jax.random.PRNGKey(0)
    k1, k2, k3, k4 = jax.random.split(key, 4)

    # --- Check 1: small single-tile case (module's simple usage) -------------
    batch, in_feat, out_feat = 8, 32, 64
    x = jax.random.normal(k1, (batch, in_feat), jnp.float32)
    weight, bias = init_linear_params(k2, in_feat, out_feat)

    layer = PallasLinear(weight, bias, activate=True)
    out = jax.block_until_ready(layer(x))
    assert out.shape == (batch, out_feat)
    assert jnp.allclose(out, _ref(x, weight, bias, True), atol=1e-5, rtol=1e-5)

    # --- Check 2: non-aligned shapes forcing a multi-tile 3-D grid + padding --
    batch2, in2, out2 = 24, 300, 200
    x2 = jax.random.normal(k3, (batch2, in2), jnp.float32)
    w2, b2 = init_linear_params(k4, in2, out2)

    lin_act = PallasLinear(w2, b2, activate=True, tm=16, tn=128, tk=128)
    lin_noact = PallasLinear(w2, b2, activate=False, tm=16, tn=128, tk=128)
    out_a = jax.block_until_ready(lin_act(x2))
    out_l = jax.block_until_ready(lin_noact(x2))
    assert out_a.shape == (batch2, out2)
    assert jnp.allclose(out_a, _ref(x2, w2, b2, True), atol=1e-4, rtol=1e-4)
    assert jnp.allclose(out_l, _ref(x2, w2, b2, False), atol=1e-4, rtol=1e-4)

    print("KERNEL_OK")
</pallas_src>

<mosaic_0001>
module attributes {stable_mosaic.version = 11 : i64} {
  func.func @_linear_kernel_fused(%arg0: i32, %arg1: i32, %arg2: i32, %arg3: memref<8x128xf32, #tpu.memory_space<vmem>>, %arg4: memref<128x128xf32, #tpu.memory_space<vmem>>, %arg5: memref<1x128xf32, #tpu.memory_space<vmem>>, %arg6: memref<8x128xf32, #tpu.memory_space<vmem>>) attributes {dimension_semantics = [#tpu.dimension_semantics<parallel>, #tpu.dimension_semantics<parallel>, #tpu.dimension_semantics<arbitrary>], iteration_bounds = array<i64: 1, 1, 1>, scalar_prefetch = 0 : i64, scratch_operands = 0 : i64, tpu.core_type = #tpu.core_type<tc>, window_params = [{transform_indices = @transform_0, window_bounds = array<i64: 8, 128>}, {transform_indices = @transform_1, window_bounds = array<i64: 128, 128>}, {transform_indices = @transform_2, window_bounds = array<i64: 1, 128>}, {transform_indices = @transform_3, window_bounds = array<i64: 8, 128>}]} {
    %c0_i32 = arith.constant 0 : i32
    %0 = arith.cmpi eq, %arg2, %c0_i32 : i32
    %1 = arith.extui %0 : i1 to i32
    %c0_i32_0 = arith.constant 0 : i32
    %2 = arith.cmpi ne, %1, %c0_i32_0 : i32
    scf.if %2 {
      %cst_10 = arith.constant 0.000000e+00 : f32
      %12 = vector.broadcast %cst_10 : f32 to vector<8x128xf32>
      %c0_11 = arith.constant 0 : index
      %c0_12 = arith.constant 0 : index
      %13 = vector.load %arg6[%c0_11, %c0_12] : memref<8x128xf32, #tpu.memory_space<vmem>>, vector<8x128xf32>
      tpu.vector_store %arg6[%c0_11, %c0_12], %12 {strides = array<i32>} : memref<8x128xf32, #tpu.memory_space<vmem>>, vector<8x128xf32>,
    } else {
    }
    %c0 = arith.constant 0 : index
    %c0_1 = arith.constant 0 : index
    %3 = vector.load %arg6[%c0, %c0_1] : memref<8x128xf32, #tpu.memory_space<vmem>>, vector<8x128xf32>
    %c0_2 = arith.constant 0 : index
    %c0_3 = arith.constant 0 : index
    %4 = vector.load %arg3[%c0_2, %c0_3] : memref<8x128xf32, #tpu.memory_space<vmem>>, vector<8x128xf32>
    %c0_4 = arith.constant 0 : index
    %c0_5 = arith.constant 0 : index
    %5 = vector.load %arg4[%c0_4, %c0_5] : memref<128x128xf32, #tpu.memory_space<vmem>>, vector<128x128xf32>
    %cst = arith.constant dense<0.000000e+00> : vector<8x128xf32>
    %6 = tpu.matmul %4, %5, %cst {dimension_numbers = #tpu.dot_dimension_numbers<[1], [0], [0], [1], [0, 0, 1, 1], [], []>} : vector<8x128xf32>, vector<128x128xf32>, vector<8x128xf32> -> vector<8x128xf32>
    %7 = arith.addf %3, %6 : vector<8x128xf32>
    %c0_6 = arith.constant 0 : index
    %c0_7 = arith.constant 0 : index
    %8 = vector.load %arg6[%c0_6, %c0_7] : memref<8x128xf32, #tpu.memory_space<vmem>>, vector<8x128xf32>
    tpu.vector_store %arg6[%c0_6, %c0_7], %7 {strides = array<i32>} : memref<8x128xf32, #tpu.memory_space<vmem>>, vector<8x128xf32>,
    %c0_i32_8 = arith.constant 0 : i32
    %9 = arith.cmpi eq, %arg2, %c0_i32_8 : i32
    %10 = arith.extui %9 : i1 to i32
    %c0_i32_9 = arith.constant 0 : i32
    %11 = arith.cmpi ne, %10, %c0_i32_9 : i32
    scf.if %11 {
      %c0_10 = arith.constant 0 : index
      %c0_11 = arith.constant 0 : index
      %12 = vector.load %arg6[%c0_10, %c0_11] : memref<8x128xf32, #tpu.memory_space<vmem>>, vector<8x128xf32>
      %c0_12 = arith.constant 0 : index
      %c0_13 = arith.constant 0 : index
      %13 = vector.load %arg5[%c0_12, %c0_13] : memref<1x128xf32, #tpu.memory_space<vmem>>, vector<1x128xf32>
      %14 = vector.broadcast %13 : vector<1x128xf32> to vector<8x128xf32>
      %15 = arith.addf %12, %14 : vector<8x128xf32>
      %cst_14 = arith.constant 0.000000e+00 : f32
      %16 = vector.broadcast %cst_14 : f32 to vector<8x128xf32>
      %17 = arith.maximumf %15, %16 : vector<8x128xf32>
      %c0_15 = arith.constant 0 : index
      %c0_16 = arith.constant 0 : index
      %18 = vector.load %arg6[%c0_15, %c0_16] : memref<8x128xf32, #tpu.memory_space<vmem>>, vector<8x128xf32>
      tpu.vector_store %arg6[%c0_15, %c0_16], %17 {strides = array<i32>} : memref<8x128xf32, #tpu.memory_space<vmem>>, vector<8x128xf32>,
    } else {
    }
    return
  }
  func.func @transform_0(%arg0: i32, %arg1: i32, %arg2: i32) -> (i32, i32) {
    %c0_i32 = arith.constant 0 : i32
    return %arg0, %arg2 : i32, i32
  }
  func.func @transform_1(%arg0: i32, %arg1: i32, %arg2: i32) -> (i32, i32) {
    %c0_i32 = arith.constant 0 : i32
    return %arg2, %arg1 : i32, i32
  }
  func.func @transform_2(%arg0: i32, %arg1: i32, %arg2: i32) -> (i32, i32) {
    %c0_i32 = arith.constant 0 : i32
    %c0_i32_0 = arith.constant 0 : i32
    return %c0_i32, %arg1 : i32, i32
  }
  func.func @transform_3(%arg0: i32, %arg1: i32, %arg2: i32) -> (i32, i32) {
    %c0_i32 = arith.constant 0 : i32
    return %arg0, %arg1 : i32, i32
  }
}

</mosaic_0001>

<llo_original>
// kernel: tpu_custom_call.1
$region0: #{tpu_custom_call.1}
  #allocation0 [shape = 'u32[]', space=smem, size = 0x4, offset = 0x4, fixed_abs, tag = 'smem constant byte address 0x4 - core index']
  #allocation1 [shape = 'u32[72,128]{1,0:T(1,128)}', space=vmem, size = 0x9000, scoped, tag = 'internal scratch']
  %s0 = inlined_call_operand.hbm [shape: f32[8,128], index: 0, kind: input, shape index: {}]
  %s1 = inlined_call_operand.hbm [shape: f32[128,128], index: 1, kind: input, shape index: {}]
  %s2 = inlined_call_operand.vmem [shape: f32[1,128], index: 2, kind: input, shape index: {}]
  %s3 = inlined_call_operand.hbm [shape: f32[8,128], index: 3, kind: output, shape index: {}]
  %s4 = sld [smem:[#allocation0]]
  $region38: #{tpu_custom_call.1} parent=0
    _
  %s6 = ssub.s32 1, %s4
  %s7 = scalar_select 0, %s6, %s4
  $region1: #{tpu_custom_call.1} parent=0
    #allocation2 [shape = 'u8[4096]{0}', space=vmem, size = 0x1000, scoped, tag = 'input window, operand 0, single buffered']
    #allocation3 [shape = 's32[1]{0}', space=sflag, size = 0x4, scoped, tag = 'scoped memory for tpu_custom_call.1']
    #allocation4 [shape = 's32[1]{0}', space=sflag, size = 0x4, scoped, tag = 'scoped memory for tpu_custom_call.1']
    #allocation5 [shape = 'u8[65536]{0}', space=vmem, size = 0x10000, scoped, tag = 'input window, operand 1, single buffered']
    #allocation6 [shape = 's32[1]{0}', space=sflag, size = 0x4, scoped, tag = 'scoped memory for tpu_custom_call.1']
    #allocation7 [shape = 'u8[4096]{0}', space=vmem, size = 0x1000, scoped, tag = 'output window, operand 0, single buffered']
    %8 = vsyncpa [#allocation3], 0
    %9 = vsyncpa [#allocation6], 0
    %10 = vsyncpa [#allocation4], 0
    // Predicated region
    $region2: #{tpu_custom_call.1} parent=1 // pred_check
      _
    $region3: #{tpu_custom_call.1} parent=1 // pred_check_branch
      %12 = sbr.rel (0) target = $region5
    $region4: #{tpu_custom_call.1} parent=1 // pred_region
      %14 = vsyncadd [#allocation3], 0
      %s16 = sshll.u32 %s0, 4
      %s17 = int_to_ptr.hbm [resolvable:$true] %s16
      %s18 = sshll.u32 [#allocation2], 4
      %s19 = int_to_ptr.vmem [resolvable:$true] %s18
      %21 = dma.hbm_to_vmem [thread:$0]  %s17, 128, %s19, [#allocation3]
    $region5: #{tpu_custom_call.1} parent=1 // pred_fallthru
      _
    // Predicated region
    $region6: #{tpu_custom_call.1} parent=1 // pred_check
      _
    $region7: #{tpu_custom_call.1} parent=1 // pred_check_branch
      %23 = sbr.rel (0) target = $region9
    $region8: #{tpu_custom_call.1} parent=1 // pred_region
      %25 = vsyncadd [#allocation6], 0
      %s26 = sshll.u32 %s1, 4
      %s27 = int_to_ptr.hbm [resolvable:$true] %s26
      %s28 = sshll.u32 [#allocation5], 4
      %s29 = int_to_ptr.vmem [resolvable:$true] %s28
      %34 = dma.hbm_to_vmem [thread:$0]  %s27, 2048, %s29, [#allocation6], 128, 128, 8
    $region9: #{tpu_custom_call.1} parent=1 // pred_fallthru
      _
    // Predicated region
    $region10: #{tpu_custom_call.1} parent=1 // pred_check
      _
    $region11: #{tpu_custom_call.1} parent=1 // pred_check_branch
      %36 = sbr.rel (0) target = $region13
    $region12: #{tpu_custom_call.1} parent=1 // pred_region
      _
    $region13: #{tpu_custom_call.1} parent=1 // pred_fallthru
      _
    // Predicated region
    $region14: #{tpu_custom_call.1} parent=1 // pred_check
      _
    $region15: #{tpu_custom_call.1} parent=1 // pred_check_branch
      %38 = sbr.rel (0) target = $region17
    $region16: #{tpu_custom_call.1} parent=1 // pred_region
      %40 = dma.done [#allocation3], 128
    $region17: #{tpu_custom_call.1} parent=1 // pred_fallthru
      _
    // Predicated region
    $region18: #{tpu_custom_call.1} parent=1 // pred_check
      _
    $region19: #{tpu_custom_call.1} parent=1 // pred_check_branch
      %42 = sbr.rel (0) target = $region21
    $region20: #{tpu_custom_call.1} parent=1 // pred_region
      %44 = dma.done [#allocation6], 2048
    $region21: #{tpu_custom_call.1} parent=1 // pred_fallthru
      _
    %p45 = scmp.eq.s32.totalorder 0, 0
    // Predicated region
    $region22: #{tpu_custom_call.1} parent=1 // pred_check
      %p46 = pneg %p45
    $region23: #{tpu_custom_call.1} parent=1 // pred_check_branch
      %48 = sbr.rel (%p46) target = $region25
    $region24: #{tpu_custom_call.1} parent=1 // pred_region
      %49 = vst [vmem:[#allocation7] sm:$0xff] 0.0
    $region25: #{tpu_custom_call.1} parent=1 // pred_fallthru
      _
    %v50 = vld [vmem:[#allocation7] sm:$0xff]
    %v51 = vld [vmem:[#allocation2] sm:$0xff]
    %v52 = vld [vmem:[#allocation5] sm:$0xff]
    %v53 = vld [vmem:[#allocation5 + $0x8] sm:$0xff]
    %v54 = vld [vmem:[#allocation5 + $0x10] sm:$0xff]
    %v55 = vld [vmem:[#allocation5 + $0x18] sm:$0xff]
    %v56 = vld [vmem:[#allocation5 + $0x20] sm:$0xff]
    %v57 = vld [vmem:[#allocation5 + $0x28] sm:$0xff]
    %v58 = vld [vmem:[#allocation5 + $0x30] sm:$0xff]
    %v59 = vld [vmem:[#allocation5 + $0x38] sm:$0xff]
    %v60 = vld [vmem:[#allocation5 + $0x40] sm:$0xff]
    %v61 = vld [vmem:[#allocation5 + $0x48] sm:$0xff]
    %v62 = vld [vmem:[#allocation5 + $0x50] sm:$0xff]
    %v63 = vld [vmem:[#allocation5 + $0x58] sm:$0xff]
    %v64 = vld [vmem:[#allocation5 + $0x60] sm:$0xff]
    %v65 = vld [vmem:[#allocation5 + $0x68] sm:$0xff]
    %v66 = vld [vmem:[#allocation5 + $0x70] sm:$0xff]
    %v67 = vld [vmem:[#allocation5 + $0x78] sm:$0xff]
    %68 = vmatpush.msra.mxu0 %v67
    %69 = vmatpush.msra.mxu0 %v66
    %70 = vmatpush.msra.mxu0 %v65
    %71 = vmatpush.msra.mxu0 %v64
    %72 = vmatpush.msra.mxu0 %v63
    %73 = vmatpush.msra.mxu0 %v62
    %74 = vmatpush.msra.mxu0 %v61
    %75 = vmatpush.msra.mxu0 %v60
    %76 = vmatpush.msra.mxu0 %v59
    %77 = vmatpush.msra.mxu0 %v58
    %78 = vmatpush.msra.mxu0 %v57
    %79 = vmatpush.msra.mxu0 %v56
    %80 = vmatpush.msra.mxu0 %v55
    %81 = vmatpush.msra.mxu0 %v54
    %82 = vmatpush.msra.mxu0 %v53
    %83 = vmatpush.msra.mxu0 %v52
    %84 = vmatmul.f32.gmra.mxu0 %v51
    %v85 = vpop.f32.mrf.mxu0
    %v86 = vadd.f32 0.0, %v85
    %87 = vdwg.mxu0
    %v88 = vadd.f32 %v50, %v86
    %89 = vst [vmem:[#allocation7] sm:$0xff] %v88
    // Predicated region
    $region26: #{tpu_custom_call.1} parent=1 // pred_check
      %p90 = pneg %p45
    $region27: #{tpu_custom_call.1} parent=1 // pred_check_branch
      %92 = sbr.rel (%p90) target = $region29
    $region28: #{tpu_custom_call.1} parent=1 // pred_region
      %v93 = vld [vmem:[#allocation7] sm:$0xff]
      %v94 = vld [vmem:[%s2] sm:$0x1]
      %v96 = vperm.slane %v94, 0
      %v98 = vadd.f32 %v93, %v96
      %v99 = vmax.f32 %v98, 0.0
      %100 = vst [vmem:[#allocation7] sm:$0xff] %v99
    $region29: #{tpu_custom_call.1} parent=1 // pred_fallthru
      _
    // Predicated region
    $region30: #{tpu_custom_call.1} parent=1 // pred_check
      _
    $region31: #{tpu_custom_call.1} parent=1 // pred_check_branch
      %102 = sbr.rel (0) target = $region33
    $region32: #{tpu_custom_call.1} parent=1 // pred_region
      %104 = vsyncadd [#allocation4], 0
      %s106 = sshll.u32 [#allocation7], 4
      %s107 = int_to_ptr.vmem [resolvable:$true] %s106
      %s108 = sshll.u32 %s3, 4
      %s109 = int_to_ptr.hbm [resolvable:$true] %s108
      %111 = dma.vmem_to_hbm [thread:$0]  %s107, 128, %s109, [#allocation4]
    $region33: #{tpu_custom_call.1} parent=1 // pred_fallthru
      _
    // Predicated region
    $region34: #{tpu_custom_call.1} parent=1 // pred_check
      _
    $region35: #{tpu_custom_call.1} parent=1 // pred_check_branch
      %113 = sbr.rel (0) target = $region37
    $region36: #{tpu_custom_call.1} parent=1 // pred_region
      %115 = dma.done [#allocation4], 128
    $region37: #{tpu_custom_call.1} parent=1 // pred_fallthru
      _
    %116 = vsyncpa [#allocation3], 1
    %117 = vsyncpa [#allocation6], 1
    %118 = vsyncpa [#allocation4], 1

</llo_original>
